<compile_context>
chip_gen: v7x
topology: tpu7x:2x2x1
jax: 0.10.0
libtpu: 0.0.40
codegen_flags: <defaults>
</compile_context>

<pallas_src>
import jax
import jax.numpy as jnp
from jax.experimental import pallas as pl
from jax.experimental.pallas import tpu as pltpu

LANE = 128
ROW_GRAN = 16          # bf16 packs 2 rows/sublane -> use 16-row tile granularity


def _round_up(x, m):
    return (x + m - 1) // m * m


def _dfsnet_kernel(x_ref, len_ref, tidx_ref,
                   w_enc_ref, b_enc_ref,
                   w_head_ref, b_head_ref,
                   out_ref):
    """One batch tile: fused masked-mean encoder + (classifier|policy) heads.

    x_ref      : (TB, TFp) bf16  lane-dense flattened (time*feature) sequences
    len_ref    : (TB, 1)   f32   per-sample lengths
    tidx_ref   : (1, TFp)  f32   time index of each flattened column (T for pad cols)
    w_enc_ref  : (TFp, Hp) bf16  encoder weight replicated T times along K
    b_enc_ref  : (1, Hp)   f32
    w_head_ref : (Hp, OP)  bf16  [classifier | policy | zero-pad] fused head
    b_head_ref : (1, OP)   f32
    out_ref    : (TB, OP)  bf16  lane-dense fused head output
    """
    lens = len_ref[...]                                        # (TB, 1)
    # Exact reciprocal (tiny (TB,1) op, off the critical path) -> unbiased mean.
    inv_len = 1.0 / jnp.maximum(lens, 1.0)                     # (TB, 1)
    # Time mask with 1/len folded in; padded columns carry tidx = T -> mask 0.
    mask = jnp.where(tidx_ref[...] < lens, inv_len, 0.0)       # (TB, TFp) f32

    xm = (x_ref[...].astype(jnp.float32) * mask).astype(jnp.bfloat16)

    # Mean-pool fused into the encoder matmul via the T-replicated weight:
    #   sum_t sum_f x[b,t,f]/len[b] * W[f,h]  ==  (x_flat * mask) @ W_rep.
    hidden = jnp.tanh(
        jnp.dot(xm, w_enc_ref[...], preferred_element_type=jnp.float32)
        + b_enc_ref[...])                                      # (TB, Hp) f32

    # Fused classifier + policy head: one lane-dense 128-wide output write (bf16).
    out_ref[...] = (
        jnp.dot(hidden.astype(jnp.bfloat16), w_head_ref[...],
                preferred_element_type=jnp.float32)
        + b_head_ref[...]).astype(out_ref.dtype)


def _choose_tb(b, tfp, op, vmem_budget=16 << 20, min_grid_steps=8, tb_cap=1024):
    """Pick the batch tile: big enough to amortize per-step overhead, small
    enough to fit double-buffered tiles in a v7x-safe VMEM budget and to keep
    the grid deep enough for pipelining / megacore sharding."""
    per_row = 2 * (tfp * 2) + 2 * (op * 2)          # 2x-buffered bf16 in + out rows
    tb = min(tb_cap, max(ROW_GRAN, vmem_budget // per_row))
    if b // tb < min_grid_steps:                    # keep >= ~8 grid steps when big
        tb = max(ROW_GRAN, b // min_grid_steps)
    if tb >= 256:                                   # MXU-friendly M on v6e/v7x
        tb = (tb // 256) * 256
    else:
        tb = max(ROW_GRAN, (tb // ROW_GRAN) * ROW_GRAN)
    tb = min(tb, _round_up(b, ROW_GRAN))            # never tile wider than the batch
    return int(tb)


def _run_dfsnet_kernel(x2d, lens_f, tidx, params, tb):
    bp, tfp = x2d.shape
    hp = params["w_enc_rep"].shape[1]
    op = params["w_head"].shape[1]
    grid = (bp // tb,)

    flops = 2 * bp * (tfp * hp + hp * op) + bp * tfp
    transcendentals = bp * (hp + 1)
    bytes_accessed = (bp * tfp * 2 + bp * 4 + tfp * 4 + bp * op * 2
                      + (tfp * hp + hp * op) * 2 + (hp + op) * 4)

    # Explicit VMEM budget (resident weights + double-buffered tiles), clamped
    # below v7x's 64 MiB per-core VMEM with headroom.
    resident = (tfp * hp + hp * op) * 2 + (hp + op) * 4 + tfp * 4
    tiles = 2 * tb * tfp * 2 + 2 * tb * op * 2 + 2 * tb * 4
    vmem_limit = int(min(max(2 * (resident + tiles), 8 << 20), 48 << 20))

    return pl.pallas_call(
        _dfsnet_kernel,
        grid=grid,
        in_specs=[
            pl.BlockSpec((tb, tfp), lambda i: (i, 0)),   # x tile (lane-dense bf16)
            pl.BlockSpec((tb, 1), lambda i: (i, 0)),     # lengths tile
            pl.BlockSpec((1, tfp), lambda i: (0, 0)),    # flattened-column time index
            pl.BlockSpec((tfp, hp), lambda i: (0, 0)),   # replicated encoder weight
            pl.BlockSpec((1, hp), lambda i: (0, 0)),     # encoder bias
            pl.BlockSpec((hp, op), lambda i: (0, 0)),    # fused head weight
            pl.BlockSpec((1, op), lambda i: (0, 0)),     # fused head bias
        ],
        out_specs=pl.BlockSpec((tb, op), lambda i: (i, 0)),
        out_shape=jax.ShapeDtypeStruct((bp, op), jnp.bfloat16),
        compiler_params=pltpu.CompilerParams(
            dimension_semantics=("parallel",),
            vmem_limit_bytes=vmem_limit),
        cost_estimate=pl.CostEstimate(
            flops=flops,
            transcendentals=transcendentals,
            bytes_accessed=bytes_accessed),
    )(x2d, lens_f, tidx,
      params["w_enc_rep"], params["b_enc"],
      params["w_head"], params["b_head"])


def dfsnet_forward(params, inputs, length):
    """Mirrors DFSNet.forward.

    The reference sorts by descending length only so a packed-RNN encoder can
    consume the batch, then un-sorts every output.  With the per-sample,
    order-invariant encoder used here the sort gather and the inverse gather
    cancel exactly, so both are skipped (saves a full HBM pass over inputs).
    """
    b, t, f = inputs.shape
    c = params["n_classes"]
    a = params["n_actions"]
    tfp = params["w_enc_rep"].shape[0]
    op = params["w_head"].shape[1]

    # Lane-dense bf16 input layout: (B, T, F) -> (B, T*F), zero-pad to TFp columns.
    x2d = inputs.reshape(b, t * f)
    if tfp != t * f:
        x2d = jnp.pad(x2d, ((0, 0), (0, tfp - t * f)))
    x2d = x2d.astype(jnp.bfloat16)

    tb = _choose_tb(b, tfp, op)
    bp = _round_up(b, tb)
    steps = bp // tb
    if steps > 1 and steps % 2 == 1:     # keep the grid even for v7x's two TCs
        bp += tb
    if bp != b:
        x2d = jnp.pad(x2d, ((0, bp - b), (0, 0)))
        length_p = jnp.pad(length, (0, bp - b))
    else:
        length_p = length
    lens_f = length_p.astype(jnp.float32)[:, None]             # (Bp, 1)

    # Time index of each flattened column; padded columns get T so they mask out.
    tidx = jnp.full((1, tfp), float(t), jnp.float32)
    tidx = tidx.at[0, : t * f].set((jnp.arange(t * f) // f).astype(jnp.float32))

    out = _run_dfsnet_kernel(x2d, lens_f, tidx, params, tb)     # (Bp, OP) bf16

    p_y_logit = out[:b, :c].astype(jnp.float32)
    q_val = out[:b, c:c + a].astype(jnp.float32)
    # encoder.weight stand-in: fraction of observed timesteps, original order.
    weight = length.astype(jnp.float32) / float(t)
    return p_y_logit, q_val, weight


def init_params(key, n_features, seq_len, hidden, n_classes, n_actions):
    """Synthetic encoder/classifier/policy weights, stored padded & MXU-ready.

    The encoder weight is replicated seq_len times along K so the length-masked
    mean-pool fuses into a single K = T*F matmul inside the kernel.
    """
    k1, k2, k3 = jax.random.split(key, 3)
    scale = 0.1
    hp = _round_up(hidden, LANE)
    op = _round_up(n_classes + n_actions, LANE)
    tfp = _round_up(seq_len * n_features, LANE)

    w_enc = scale * jax.random.normal(k1, (n_features, hidden), jnp.float32)
    w_clf = scale * jax.random.normal(k2, (hidden, n_classes), jnp.float32)
    w_pol = scale * jax.random.normal(k3, (hidden, n_actions), jnp.float32)

    w_rep = jnp.tile(w_enc, (seq_len, 1))                       # (T*F, H)
    w_enc_rep = jnp.zeros((tfp, hp), jnp.float32)
    w_enc_rep = w_enc_rep.at[: seq_len * n_features, :hidden].set(w_rep)

    w_head = jnp.zeros((hp, op), jnp.float32)
    w_head = w_head.at[:hidden, :n_classes].set(w_clf)
    w_head = w_head.at[:hidden, n_classes:n_classes + n_actions].set(w_pol)

    return {
        "w_enc_rep": w_enc_rep.astype(jnp.bfloat16),   # (TFp, Hp)
        "b_enc": jnp.zeros((1, hp), jnp.float32),      # (1, Hp)
        "w_head": w_head.astype(jnp.bfloat16),         # (Hp, OP) = [clf | pol | 0-pad]
        "b_head": jnp.zeros((1, op), jnp.float32),     # (1, OP)
        "n_classes": n_classes,
        "n_actions": n_actions,
        "hidden": hidden,
        "seq_len": seq_len,
    }


if __name__ == "__main__":
    # Small shapes consistent with the module: a batch of padded sequences.
    B, T, F = 4, 8, 16          # batch, max seq len, n_features  (T*F = 128, lane-dense)
    H = 32                      # encoder hidden size
    N_CLASSES = 5               # classifier.output_size (!= 2 per module assert)
    N_ACTIONS = F + 1           # policy.n_actions (select-a-feature + stop)

    root = jax.random.PRNGKey(0)
    k_param, k_x, k_len = jax.random.split(root, 3)

    params = init_params(k_param, F, T, H, N_CLASSES, N_ACTIONS)

    inputs = jax.random.normal(k_x, (B, T, F), jnp.float32)
    length = jax.random.randint(k_len, (B,), 1, T + 1, dtype=jnp.int32)

    # Zero out padded timesteps (as a batch from pad_packed_sequence would be).
    t_mask = (jnp.arange(T)[None, :] < length[:, None]).astype(jnp.float32)
    inputs = inputs * t_mask[:, :, None]

    p_y_logit, q_val, weight = dfsnet_forward(params, inputs, length)
    jax.block_until_ready((p_y_logit, q_val, weight))

    assert p_y_logit.shape == (B, N_CLASSES)
    assert q_val.shape == (B, N_ACTIONS)
    assert weight.shape == (B,)
    # TODO(synk): the reference's encoder/classifier/policy are injected sub-modules
    # with no fixed architecture; a masked-mean + linear stack stands in for them,
    # encoder.weight is modeled as the observed-length fraction, and the sort /
    # un-sort gathers are elided because that stand-in encoder is order-invariant.
    print("KERNEL_OK")
</pallas_src>

<mosaic_0001>
module attributes {stable_mosaic.version = 11 : i64} {
  func.func @_dfsnet_kernel(%arg0: i32, %arg1: memref<16x128xbf16, #tpu.memory_space<vmem>>, %arg2: memref<16x1xf32, #tpu.memory_space<vmem>>, %arg3: memref<1x128xf32, #tpu.memory_space<vmem>>, %arg4: memref<128x128xbf16, #tpu.memory_space<vmem>>, %arg5: memref<1x128xf32, #tpu.memory_space<vmem>>, %arg6: memref<128x128xbf16, #tpu.memory_space<vmem>>, %arg7: memref<1x128xf32, #tpu.memory_space<vmem>>, %arg8: memref<16x128xbf16, #tpu.memory_space<vmem>>) attributes {dimension_semantics = [#tpu.dimension_semantics<parallel>], iteration_bounds = array<i64: 1>, scalar_prefetch = 0 : i64, scratch_operands = 0 : i64, tpu.core_type = #tpu.core_type<tc>, window_params = [{transform_indices = @transform_0, window_bounds = array<i64: 16, 128>}, {transform_indices = @transform_1, window_bounds = array<i64: 16, 1>}, {pipeline_mode = #tpu.pipeline_mode<synchronous>, transform_indices = @transform_2, window_bounds = array<i64: 1, 128>}, {pipeline_mode = #tpu.pipeline_mode<synchronous>, transform_indices = @transform_3, window_bounds = array<i64: 128, 128>}, {pipeline_mode = #tpu.pipeline_mode<synchronous>, transform_indices = @transform_4, window_bounds = array<i64: 1, 128>}, {pipeline_mode = #tpu.pipeline_mode<synchronous>, transform_indices = @transform_5, window_bounds = array<i64: 128, 128>}, {pipeline_mode = #tpu.pipeline_mode<synchronous>, transform_indices = @transform_6, window_bounds = array<i64: 1, 128>}, {transform_indices = @transform_7, window_bounds = array<i64: 16, 128>}]} {
    %c0 = arith.constant 0 : index
    %c0_0 = arith.constant 0 : index
    %0 = vector.load %arg2[%c0, %c0_0] : memref<16x1xf32, #tpu.memory_space<vmem>>, vector<16x1xf32>
    %cst = arith.constant 1.000000e+00 : f32
    %1 = vector.broadcast %cst : f32 to vector<16x1xf32>
    %2 = arith.maximumf %0, %1 : vector<16x1xf32>
    %cst_1 = arith.constant 1.000000e+00 : f32
    %3 = vector.broadcast %cst_1 : f32 to vector<16x1xf32>
    %4 = arith.divf %3, %2 : vector<16x1xf32>
    %c0_2 = arith.constant 0 : index
    %c0_3 = arith.constant 0 : index
    %5 = vector.load %arg3[%c0_2, %c0_3] : memref<1x128xf32, #tpu.memory_space<vmem>>, vector<1x128xf32>
    %6 = vector.broadcast %5 : vector<1x128xf32> to vector<16x128xf32>
    %7 = vector.broadcast %0 : vector<16x1xf32> to vector<16x128xf32>
    %8 = arith.cmpf olt, %6, %7 : vector<16x128xf32>
    %cst_4 = arith.constant 0.000000e+00 : f32
    %9 = vector.shape_cast %4 : vector<16x1xf32> to vector<16x1xf32>
    %10 = vector.broadcast %9 : vector<16x1xf32> to vector<16x128xf32>
    %11 = vector.broadcast %cst_4 : f32 to vector<16x128xf32>
    %12 = arith.select %8, %10, %11 : vector<16x128xi1>, vector<16x128xf32>
    %c0_5 = arith.constant 0 : index
    %c0_6 = arith.constant 0 : index
    %13 = vector.load %arg1[%c0_5, %c0_6] : memref<16x128xbf16, #tpu.memory_space<vmem>>, vector<16x128xbf16>
    %14 = arith.extf %13 : vector<16x128xbf16> to vector<16x128xf32>
    %15 = arith.mulf %14, %12 : vector<16x128xf32>
    %16 = arith.truncf %15 : vector<16x128xf32> to vector<16x128xbf16>
    %c0_7 = arith.constant 0 : index
    %c0_8 = arith.constant 0 : index
    %17 = vector.load %arg4[%c0_7, %c0_8] : memref<128x128xbf16, #tpu.memory_space<vmem>>, vector<128x128xbf16>
    %cst_9 = arith.constant dense<0.000000e+00> : vector<16x128xf32>
    %18 = tpu.matmul %16, %17, %cst_9 {dimension_numbers = #tpu.dot_dimension_numbers<[1], [0], [0], [1], [0, 0, 1, 1], [], []>} : vector<16x128xbf16>, vector<128x128xbf16>, vector<16x128xf32> -> vector<16x128xf32>
    %c0_10 = arith.constant 0 : index
    %c0_11 = arith.constant 0 : index
    %19 = vector.load %arg5[%c0_10, %c0_11] : memref<1x128xf32, #tpu.memory_space<vmem>>, vector<1x128xf32>
    %20 = vector.broadcast %19 : vector<1x128xf32> to vector<16x128xf32>
    %21 = arith.addf %18, %20 : vector<16x128xf32>
    %22 = math.tanh %21 : vector<16x128xf32>
    %23 = arith.truncf %22 : vector<16x128xf32> to vector<16x128xbf16>
    %c0_12 = arith.constant 0 : index
    %c0_13 = arith.constant 0 : index
    %24 = vector.load %arg6[%c0_12, %c0_13] : memref<128x128xbf16, #tpu.memory_space<vmem>>, vector<128x128xbf16>
    %cst_14 = arith.constant dense<0.000000e+00> : vector<16x128xf32>
    %25 = tpu.matmul %23, %24, %cst_14 {dimension_numbers = #tpu.dot_dimension_numbers<[1], [0], [0], [1], [0, 0, 1, 1], [], []>} : vector<16x128xbf16>, vector<128x128xbf16>, vector<16x128xf32> -> vector<16x128xf32>
    %c0_15 = arith.constant 0 : index
    %c0_16 = arith.constant 0 : index
    %26 = vector.load %arg7[%c0_15, %c0_16] : memref<1x128xf32, #tpu.memory_space<vmem>>, vector<1x128xf32>
    %27 = vector.broadcast %26 : vector<1x128xf32> to vector<16x128xf32>
    %28 = arith.addf %25, %27 : vector<16x128xf32>
    %29 = arith.truncf %28 : vector<16x128xf32> to vector<16x128xbf16>
    %c0_17 = arith.constant 0 : index
    %c0_18 = arith.constant 0 : index
    %30 = vector.load %arg8[%c0_17, %c0_18] : memref<16x128xbf16, #tpu.memory_space<vmem>>, vector<16x128xbf16>
    tpu.vector_store %arg8[%c0_17, %c0_18], %29 {strides = array<i32>} : memref<16x128xbf16, #tpu.memory_space<vmem>>, vector<16x128xbf16>,
    return
  }
  func.func @transform_0(%arg0: i32) -> (i32, i32) {
    %c0_i32 = arith.constant 0 : i32
    %c0_i32_0 = arith.constant 0 : i32
    return %arg0, %c0_i32 : i32, i32
  }
  func.func @transform_1(%arg0: i32) -> (i32, i32) {
    %c0_i32 = arith.constant 0 : i32
    %c0_i32_0 = arith.constant 0 : i32
    return %arg0, %c0_i32 : i32, i32
  }
  func.func @transform_2(%arg0: i32) -> (i32, i32) {
    %c0_i32 = arith.constant 0 : i32
    %c0_i32_0 = arith.constant 0 : i32
    %c0_i32_1 = arith.constant 0 : i32
    return %c0_i32, %c0_i32_0 : i32, i32
  }
  func.func @transform_3(%arg0: i32) -> (i32, i32) {
    %c0_i32 = arith.constant 0 : i32
    %c0_i32_0 = arith.constant 0 : i32
    %c0_i32_1 = arith.constant 0 : i32
    return %c0_i32, %c0_i32_0 : i32, i32
  }
  func.func @transform_4(%arg0: i32) -> (i32, i32) {
    %c0_i32 = arith.constant 0 : i32
    %c0_i32_0 = arith.constant 0 : i32
    %c0_i32_1 = arith.constant 0 : i32
    return %c0_i32, %c0_i32_0 : i32, i32
  }
  func.func @transform_5(%arg0: i32) -> (i32, i32) {
    %c0_i32 = arith.constant 0 : i32
    %c0_i32_0 = arith.constant 0 : i32
    %c0_i32_1 = arith.constant 0 : i32
    return %c0_i32, %c0_i32_0 : i32, i32
  }
  func.func @transform_6(%arg0: i32) -> (i32, i32) {
    %c0_i32 = arith.constant 0 : i32
    %c0_i32_0 = arith.constant 0 : i32
    %c0_i32_1 = arith.constant 0 : i32
    return %c0_i32, %c0_i32_0 : i32, i32
  }
  func.func @transform_7(%arg0: i32) -> (i32, i32) {
    %c0_i32 = arith.constant 0 : i32
    %c0_i32_0 = arith.constant 0 : i32
    return %arg0, %c0_i32 : i32, i32
  }
}

</mosaic_0001>

<llo_original>
// kernel: tpu_custom_call.1
$region0: #{tpu_custom_call.1}
  #allocation0 [shape = 'u32[]', space=smem, size = 0x4, offset = 0x4, fixed_abs, tag = 'smem constant byte address 0x4 - core index']
  #allocation1 [shape = 'u32[144,128]{1,0:T(1,128)}', space=vmem, size = 0x12000, scoped, tag = 'internal scratch']
  %s0 = inlined_call_operand.vmem [shape: bf16[16,128], index: 0, kind: input, shape index: {}]
  %s1 = inlined_call_operand.vmem [shape: f32[16,1], index: 1, kind: input, shape index: {}]
  %s2 = inlined_call_operand.vmem [shape: f32[1,128], index: 2, kind: input, shape index: {}]
  %s3 = inlined_call_operand.hbm [shape: bf16[128,128], index: 3, kind: input, shape index: {}]
  %s4 = inlined_call_operand.vmem [shape: f32[1,128], index: 4, kind: input, shape index: {}]
  %s5 = inlined_call_operand.hbm [shape: bf16[128,128], index: 5, kind: input, shape index: {}]
  %s6 = inlined_call_operand.vmem [shape: f32[1,128], index: 6, kind: input, shape index: {}]
  %s7 = inlined_call_operand.hbm [shape: bf16[16,128], index: 7, kind: output, shape index: {}]
  %s8 = sld [smem:[#allocation0]]
  $region46: #{tpu_custom_call.1} parent=0
    _
  %s10 = ssub.s32 1, %s8
  %s11 = scalar_select 0, %s10, %s8
  $region1: #{tpu_custom_call.1} parent=0
    #allocation2 [shape = 'u8[32768]{0}', space=vmem, size = 0x8000, scoped, tag = 'input window, operand 3, single buffered']
    #allocation3 [shape = 's32[1]{0}', space=sflag, size = 0x4, scoped, tag = 'scoped memory for tpu_custom_call.1']
    #allocation4 [shape = 's32[1]{0}', space=sflag, size = 0x4, scoped, tag = 'scoped memory for tpu_custom_call.1']
    #allocation5 [shape = 'u8[32768]{0}', space=vmem, size = 0x8000, scoped, tag = 'input window, operand 5, single buffered']
    #allocation6 [shape = 's32[1]{0}', space=sflag, size = 0x4, scoped, tag = 'scoped memory for tpu_custom_call.1']
    #allocation7 [shape = 'u8[4096]{0}', space=vmem, size = 0x1000, scoped, tag = 'output window, operand 0, single buffered']
    %12 = vsyncpa [#allocation3], 0
    %13 = vsyncpa [#allocation6], 0
    %14 = vsyncpa [#allocation4], 0
    // Predicated region
    $region2: #{tpu_custom_call.1} parent=1 // pred_check
      _
    $region3: #{tpu_custom_call.1} parent=1 // pred_check_branch
      %16 = sbr.rel (0) target = $region5
    $region4: #{tpu_custom_call.1} parent=1 // pred_region
      _
    $region5: #{tpu_custom_call.1} parent=1 // pred_fallthru
      _
    // Predicated region
    $region6: #{tpu_custom_call.1} parent=1 // pred_check
      _
    $region7: #{tpu_custom_call.1} parent=1 // pred_check_branch
      %18 = sbr.rel (0) target = $region9
    $region8: #{tpu_custom_call.1} parent=1 // pred_region
      _
    $region9: #{tpu_custom_call.1} parent=1 // pred_fallthru
      _
    // Predicated region
    $region10: #{tpu_custom_call.1} parent=1 // pred_check
      _
    $region11: #{tpu_custom_call.1} parent=1 // pred_check_branch
      %20 = sbr.rel (0) target = $region13
    $region12: #{tpu_custom_call.1} parent=1 // pred_region
      _
    $region13: #{tpu_custom_call.1} parent=1 // pred_fallthru
      _
    // Predicated region
    $region14: #{tpu_custom_call.1} parent=1 // pred_check
      _
    $region15: #{tpu_custom_call.1} parent=1 // pred_check_branch
      %22 = sbr.rel (0) target = $region17
    $region16: #{tpu_custom_call.1} parent=1 // pred_region
      %s24 = ssub.s32 1024, 1024
      %25 = vsyncadd [#allocation3], %s24
      %s26 = sshll.u32 [#allocation2], 4
      %s27 = int_to_ptr.vmem [resolvable:$true] %s26
      %32 = dma.hbm_to_vmem [thread:$0]  %s3, 1024, %s27, [#allocation3], 64, 64, 4
    $region17: #{tpu_custom_call.1} parent=1 // pred_fallthru
      _
    // Predicated region
    $region18: #{tpu_custom_call.1} parent=1 // pred_check
      _
    $region19: #{tpu_custom_call.1} parent=1 // pred_check_branch
      %34 = sbr.rel (0) target = $region21
    $region20: #{tpu_custom_call.1} parent=1 // pred_region
      _
    $region21: #{tpu_custom_call.1} parent=1 // pred_fallthru
      _
    // Predicated region
    $region22: #{tpu_custom_call.1} parent=1 // pred_check
      _
    $region23: #{tpu_custom_call.1} parent=1 // pred_check_branch
      %36 = sbr.rel (0) target = $region25
    $region24: #{tpu_custom_call.1} parent=1 // pred_region
      %s38 = ssub.s32 1024, 1024
      %39 = vsyncadd [#allocation6], %s38
      %s40 = sshll.u32 [#allocation5], 4
      %s41 = int_to_ptr.vmem [resolvable:$true] %s40
      %46 = dma.hbm_to_vmem [thread:$0]  %s5, 1024, %s41, [#allocation6], 64, 64, 4
    $region25: #{tpu_custom_call.1} parent=1 // pred_fallthru
      _
    // Predicated region
    $region26: #{tpu_custom_call.1} parent=1 // pred_check
      _
    $region27: #{tpu_custom_call.1} parent=1 // pred_check_branch
      %48 = sbr.rel (0) target = $region29
    $region28: #{tpu_custom_call.1} parent=1 // pred_region
      _
    $region29: #{tpu_custom_call.1} parent=1 // pred_fallthru
      _
    // Predicated region
    $region30: #{tpu_custom_call.1} parent=1 // pred_check
      _
    $region31: #{tpu_custom_call.1} parent=1 // pred_check_branch
      %50 = sbr.rel (0) target = $region33
    $region32: #{tpu_custom_call.1} parent=1 // pred_region
      %51 = dma.done [#allocation3], 1024
    $region33: #{tpu_custom_call.1} parent=1 // pred_fallthru
      _
    // Predicated region
    $region34: #{tpu_custom_call.1} parent=1 // pred_check
      _
    $region35: #{tpu_custom_call.1} parent=1 // pred_check_branch
      %53 = sbr.rel (0) target = $region37
    $region36: #{tpu_custom_call.1} parent=1 // pred_region
      %54 = dma.done [#allocation6], 1024
    $region37: #{tpu_custom_call.1} parent=1 // pred_fallthru
      _
    %v56 = vld [vmem:[%s1] sm:$0xff]
    %v57 = vld [vmem:[%s1 + $0x8] sm:$0xff]
    %v58 = vmax.f32 %v56, 1.0
    %v59 = vmax.f32 %v57, 1.0
    %v60 = vrcp.pop %v58
    %v61 = vmul.f32 1.0, %v60
    %v62 = vrcp.pop %v59
    %v63 = vmul.f32 1.0, %v62
    %v64 = vld [vmem:[%s2] sm:$0x1]
    %v66 = vlaneseq
    %v67 = vshrl.u32 %v66, 7
    %v68 = vsub.s32 0, %v67
    %v69 = vrot.slane %v64, %v68
    %72 = vset.pattern.permute.xlu0 0
    %73 = vperm.xlu0 %72, %v56
    %v74 = vpop.permute.xlu0 %73
    %77 = vset.pattern.permute.xlu0 0
    %78 = vperm.xlu0 %77, %v57
    %v79 = vpop.permute.xlu0 %78
    %vm81 = vcmp.lt.f32.partialorder %v69, %v74
    %vm82 = vcmp.lt.f32.partialorder %v69, %v79
    %84 = vset.pattern.permute.xlu0 0
    %85 = vperm.xlu0 %84, %v61
    %v86 = vpop.permute.xlu0 %85
    %89 = vset.pattern.permute.xlu0 0
    %90 = vperm.xlu0 %89, %v63
    %v91 = vpop.permute.xlu0 %90
    %v93 = vsel %vm81, %v86, 0.0
    %v94 = vsel %vm82, %v91, 0.0
    %v95 = vld [vmem:[%s0] sm:$0xf]
    %v96 = vld [vmem:[%s0 + $0x4] sm:$0xf]
    %v97 = vunpack.c.l.bf16 %v95
    %v98 = vunpack.c.l.bf16 %v96
    %v99 = vmul.f32 %v97, %v93
    %v100 = vmul.f32 %v98, %v94
    %v101 = vpack.c.bf16 %v100, %v99
    %v102 = vld [vmem:[#allocation2] sm:$0xf]
    %v103 = vld [vmem:[#allocation2 + $0x4] sm:$0xf]
    %v104 = vld [vmem:[#allocation2 + $0x8] sm:$0xf]
    %v105 = vld [vmem:[#allocation2 + $0xc] sm:$0xf]
    %v106 = vld [vmem:[#allocation2 + $0x10] sm:$0xf]
    %v107 = vld [vmem:[#allocation2 + $0x14] sm:$0xf]
    %v108 = vld [vmem:[#allocation2 + $0x18] sm:$0xf]
    %v109 = vld [vmem:[#allocation2 + $0x1c] sm:$0xf]
    %v110 = vld [vmem:[#allocation2 + $0x20] sm:$0xf]
    %v111 = vld [vmem:[#allocation2 + $0x24] sm:$0xf]
    %v112 = vld [vmem:[#allocation2 + $0x28] sm:$0xf]
    %v113 = vld [vmem:[#allocation2 + $0x2c] sm:$0xf]
    %v114 = vld [vmem:[#allocation2 + $0x30] sm:$0xf]
    %v115 = vld [vmem:[#allocation2 + $0x34] sm:$0xf]
    %v116 = vld [vmem:[#allocation2 + $0x38] sm:$0xf]
    %v117 = vld [vmem:[#allocation2 + $0x3c] sm:$0xf]
    %v118 = vld [vmem:[%s4] sm:$0x1]
    %v120 = vlaneseq
    %v121 = vshrl.u32 %v120, 7
    %v122 = vsub.s32 0, %v121
    %v123 = vrot.slane %v118, %v122
    %v141 = vunpack.c.l.b16 %v102
    %v142 = vunpack.c.l.b16 %v103
    %v143 = vunpack.c.l.b16 %v104
    %v144 = vunpack.c.l.b16 %v105
    %v145 = vunpack.c.l.b16 %v106
    %v146 = vunpack.c.l.b16 %v107
    %v147 = vunpack.c.l.b16 %v108
    %v148 = vunpack.c.l.b16 %v109
    %v149 = vunpack.c.l.b16 %v110
    %v150 = vunpack.c.l.b16 %v111
    %v151 = vunpack.c.l.b16 %v112
    %v152 = vunpack.c.l.b16 %v113
    %v153 = vunpack.c.l.b16 %v114
    %v154 = vunpack.c.l.b16 %v115
    %v155 = vunpack.c.l.b16 %v116
    %v156 = vunpack.c.l.b16 %v117
    %v157 = vpack.c.b16 %v142, %v141
    %v158 = vpack.c.b16 %v144, %v143
    %v159 = vpack.c.b16 %v146, %v145
    %v160 = vpack.c.b16 %v148, %v147
    %v161 = vpack.c.b16 %v150, %v149
    %v162 = vpack.c.b16 %v152, %v151
    %v163 = vpack.c.b16 %v154, %v153
    %v164 = vpack.c.b16 %v156, %v155
    %173 = vmatprep.subr.bf16.mxu0 0
    %174 = vmatpush1.bf16.msra.mxu0 %v157
    %175 = vmatprep.subr.bf16.mxu0 0
    %176 = vmatpush1.bf16.msra.mxu0 %v158
    %177 = vmatprep.subr.bf16.mxu0 0
    %178 = vmatpush1.bf16.msra.mxu0 %v159
    %179 = vmatprep.subr.bf16.mxu0 0
    %180 = vmatpush1.bf16.msra.mxu0 %v160
    %181 = vmatprep.subr.bf16.mxu0 0
    %182 = vmatpush1.bf16.msra.mxu0 %v161
    %183 = vmatprep.subr.bf16.mxu0 0
    %184 = vmatpush1.bf16.msra.mxu0 %v162
    %185 = vmatprep.subr.bf16.mxu0 0
    %186 = vmatpush1.bf16.msra.mxu0 %v163
    %187 = vmatprep.subr.bf16.mxu0 0
    %188 = vmatpush1.bf16.msra.mxu0 %v164
    %189 = vmatprep.subr.bf16.mxu0 0
    %190 = vmatpush1.bf16.msra.mxu0 0
    %191 = vmatprep.subr.bf16.mxu0 0
    %192 = vmatpush1.bf16.msra.mxu0 0
    %193 = vmatprep.subr.bf16.mxu0 0
    %194 = vmatpush1.bf16.msra.mxu0 0
    %195 = vmatprep.subr.bf16.mxu0 0
    %196 = vmatpush1.bf16.msra.mxu0 0
    %197 = vmatprep.subr.bf16.mxu0 0
    %198 = vmatpush1.bf16.msra.mxu0 0
    %199 = vmatprep.subr.bf16.mxu0 0
    %200 = vmatpush1.bf16.msra.mxu0 0
    %201 = vmatprep.subr.bf16.mxu0 0
    %202 = vmatpush1.bf16.msra.mxu0 0
    %203 = vmatprep.subr.bf16.mxu0 0
    %204 = vmatpush1.bf16.msra.mxu0 0
    %205 = vmatprep.mubr.bf16.mxu0 0
    %206 = vmatmul.mubr.bf16.gmra.mrb[0].mxu0 %v101
    %v207 = vpop.f32.mrb[0].mxu0
    %v208 = vadd.f32 %v123, %v207
    %v209 = vpop.f32.mrb[0].mxu0
    %v210 = vpop.f32.mrb[0].mxu0
    %v211 = vadd.f32 %v123, %v210
    %v212 = vpop.f32.mrb[0].mxu0
    %213 = vdwg.mxu0
    %v214 = vtanh.pop %v208
    %v215 = vtanh.pop %v211
    %v216 = vpack.c.bf16 %v215, %v214
    %v217 = vld [vmem:[#allocation5] sm:$0xf]
    %v218 = vld [vmem:[#allocation5 + $0x4] sm:$0xf]
    %v219 = vld [vmem:[#allocation5 + $0x8] sm:$0xf]
    %v220 = vld [vmem:[#allocation5 + $0xc] sm:$0xf]
    %v221 = vld [vmem:[#allocation5 + $0x10] sm:$0xf]
    %v222 = vld [vmem:[#allocation5 + $0x14] sm:$0xf]
    %v223 = vld [vmem:[#allocation5 + $0x18] sm:$0xf]
    %v224 = vld [vmem:[#allocation5 + $0x1c] sm:$0xf]
    %v225 = vld [vmem:[#allocation5 + $0x20] sm:$0xf]
    %v226 = vld [vmem:[#allocation5 + $0x24] sm:$0xf]
    %v227 = vld [vmem:[#allocation5 + $0x28] sm:$0xf]
    %v228 = vld [vmem:[#allocation5 + $0x2c] sm:$0xf]
    %v229 = vld [vmem:[#allocation5 + $0x30] sm:$0xf]
    %v230 = vld [vmem:[#allocation5 + $0x34] sm:$0xf]
    %v231 = vld [vmem:[#allocation5 + $0x38] sm:$0xf]
    %v232 = vld [vmem:[#allocation5 + $0x3c] sm:$0xf]
    %v233 = vld [vmem:[%s6] sm:$0x1]
    %v235 = vlaneseq
    %v236 = vshrl.u32 %v235, 7
    %v237 = vsub.s32 0, %v236
    %v238 = vrot.slane %v233, %v237
    %v256 = vunpack.c.l.b16 %v217
    %v257 = vunpack.c.l.b16 %v218
    %v258 = vunpack.c.l.b16 %v219
    %v259 = vunpack.c.l.b16 %v220
    %v260 = vunpack.c.l.b16 %v221
    %v261 = vunpack.c.l.b16 %v222
    %v262 = vunpack.c.l.b16 %v223
    %v263 = vunpack.c.l.b16 %v224
    %v264 = vunpack.c.l.b16 %v225
    %v265 = vunpack.c.l.b16 %v226
    %v266 = vunpack.c.l.b16 %v227
    %v267 = vunpack.c.l.b16 %v228
    %v268 = vunpack.c.l.b16 %v229
    %v269 = vunpack.c.l.b16 %v230
    %v270 = vunpack.c.l.b16 %v231
    %v271 = vunpack.c.l.b16 %v232
    %v272 = vpack.c.b16 %v257, %v256
    %v273 = vpack.c.b16 %v259, %v258
    %v274 = vpack.c.b16 %v261, %v260
    %v275 = vpack.c.b16 %v263, %v262
    %v276 = vpack.c.b16 %v265, %v264
    %v277 = vpack.c.b16 %v267, %v266
    %v278 = vpack.c.b16 %v269, %v268
    %v279 = vpack.c.b16 %v271, %v270
    %288 = vmatprep.subr.bf16.mxu0 0
    %289 = vmatpush1.bf16.msra.mxu0 %v272
    %290 = vmatprep.subr.bf16.mxu0 0
    %291 = vmatpush1.bf16.msra.mxu0 %v273
    %292 = vmatprep.subr.bf16.mxu0 0
    %293 = vmatpush1.bf16.msra.mxu0 %v274
    %294 = vmatprep.subr.bf16.mxu0 0
    %295 = vmatpush1.bf16.msra.mxu0 %v275
    %296 = vmatprep.subr.bf16.mxu0 0
    %297 = vmatpush1.bf16.msra.mxu0 %v276
    %298 = vmatprep.subr.bf16.mxu0 0
    %299 = vmatpush1.bf16.msra.mxu0 %v277
    %300 = vmatprep.subr.bf16.mxu0 0
    %301 = vmatpush1.bf16.msra.mxu0 %v278
    %302 = vmatprep.subr.bf16.mxu0 0
    %303 = vmatpush1.bf16.msra.mxu0 %v279
    %304 = vmatprep.subr.bf16.mxu0 0
    %305 = vmatpush1.bf16.msra.mxu0 0
    %306 = vmatprep.subr.bf16.mxu0 0
    %307 = vmatpush1.bf16.msra.mxu0 0
    %308 = vmatprep.subr.bf16.mxu0 0
    %309 = vmatpush1.bf16.msra.mxu0 0
    %310 = vmatprep.subr.bf16.mxu0 0
    %311 = vmatpush1.bf16.msra.mxu0 0
    %312 = vmatprep.subr.bf16.mxu0 0
    %313 = vmatpush1.bf16.msra.mxu0 0
    %314 = vmatprep.subr.bf16.mxu0 0
    %315 = vmatpush1.bf16.msra.mxu0 0
    %316 = vmatprep.subr.bf16.mxu0 0
    %317 = vmatpush1.bf16.msra.mxu0 0
    %318 = vmatprep.subr.bf16.mxu0 0
    %319 = vmatpush1.bf16.msra.mxu0 0
    %320 = vmatprep.mubr.bf16.mxu0 0
    %321 = vmatmul.mubr.bf16.gmra.mrb[0].mxu0 %v216
    %v322 = vpop.f32.mrb[0].mxu0
    %v323 = vadd.f32 %v238, %v322
    %v324 = vpop.f32.mrb[0].mxu0
    %v325 = vpop.f32.mrb[0].mxu0
    %v326 = vadd.f32 %v238, %v325
    %v327 = vpop.f32.mrb[0].mxu0
    %328 = vdwg.mxu0
    %v329 = vpack.c.bf16 %v326, %v323
    %v331 = vunpack.c.l.b16 %v329
    %v332 = vunpack.c.h.b16 %v329
    %v333 = vpack.c.b16 %v331, %v331
    %v334 = vpack.c.b16 %v332, %v332
    %337 = vst [vmem:[#allocation7] sm:$0xf] %v333
    %338 = vst [vmem:[#allocation7 + $0x4] sm:$0xf] %v334
    // Predicated region
    $region38: #{tpu_custom_call.1} parent=1 // pred_check
      _
    $region39: #{tpu_custom_call.1} parent=1 // pred_check_branch
      %340 = sbr.rel (0) target = $region41
    $region40: #{tpu_custom_call.1} parent=1 // pred_region
      %s342 = ssub.s32 128, 128
      %343 = vsyncadd [#allocation4], %s342
      %s344 = sshll.u32 [#allocation7], 4
      %s345 = int_to_ptr.vmem [resolvable:$true] %s344
      %350 = dma.vmem_to_hbm [thread:$0]  %s345, 128, %s7, [#allocation4], 64, 64, 4
    $region41: #{tpu_custom_call.1} parent=1 // pred_fallthru
      _
    // Predicated region
    $region42: #{tpu_custom_call.1} parent=1 // pred_check
      _
    $region43: #{tpu_custom_call.1} parent=1 // pred_check_branch
      %352 = sbr.rel (0) target = $region45
    $region44: #{tpu_custom_call.1} parent=1 // pred_region
      %353 = dma.done [#allocation4], 128
    $region45: #{tpu_custom_call.1} parent=1 // pred_fallthru
      _
    %354 = vsyncpa [#allocation3], 1
    %355 = vsyncpa [#allocation6], 1
    %356 = vsyncpa [#allocation4], 1

</llo_original>
